<compile_context>
chip_gen: v5e
topology: v5e:2x2
jax: 0.10.0
libtpu: 0.0.40
codegen_flags: <defaults>
</compile_context>

<pallas_src>
import jax
import jax.numpy as jnp
from jax.experimental import pallas as pl
from jax.experimental.pallas import tpu as pltpu

_LANE = 128
_TARGET_BLOCK_BYTES = 2 * 1024 * 1024  # ~2 MiB per block (4 bufs = 8 MiB VMEM)


def _relu_kernel(x_ref, o_ref):
    o_ref[...] = jnp.maximum(x_ref[...], jnp.zeros((), dtype=x_ref.dtype))


def relu_pallas(x: jax.Array) -> jax.Array:
    """Elementwise ReLU, semantics identical to torch.Tensor.relu()."""
    orig_shape = x.shape
    dtype = x.dtype
    n = x.size
    itemsize = jnp.dtype(dtype).itemsize
    # dtype-aware sublane granularity: f32 -> 8, bf16 -> 16, int8/fp8 -> 32.
    sub = 8 * max(1, 4 // itemsize)

    # Only pad when strictly necessary, and only to a lane multiple.
    padded_len = n if n % _LANE == 0 else ((n + _LANE - 1) // _LANE) * _LANE

    flat = x.reshape(-1)
    if padded_len != n:
        flat = jnp.pad(flat, (0, padded_len - n))  # zero-pad: ReLU-invariant
    rows = padded_len // _LANE
    x2d = flat.reshape(rows, _LANE)

    # ~2 MiB block, rounded to the packed-sublane multiple.
    tile_rows = max(sub, (_TARGET_BLOCK_BYTES // (_LANE * itemsize)) // sub * sub)
    if tile_rows >= rows:
        tile_rows = rows  # full-extent block is always a legal block shape
        grid_len = 1
    else:
        grid_len = pl.cdiv(rows, tile_rows)
        # Prefer an even grid so both v7x TensorCores get work on the
        # "parallel" axis; harmless elsewhere.
        if grid_len > 1 and grid_len % 2 == 1:
            target = grid_len + 1
            tile_rows = ((pl.cdiv(rows, target) + sub - 1) // sub) * sub
            grid_len = pl.cdiv(rows, tile_rows)

    out2d = pl.pallas_call(
        _relu_kernel,
        out_shape=jax.ShapeDtypeStruct((rows, _LANE), dtype),
        grid_spec=pltpu.PrefetchScalarGridSpec(
            num_scalar_prefetch=0,
            grid=(grid_len,),
            in_specs=[pl.BlockSpec((tile_rows, _LANE), lambda i: (i, 0))],
            out_specs=pl.BlockSpec((tile_rows, _LANE), lambda i: (i, 0)),
        ),
        compiler_params=pltpu.CompilerParams(
            dimension_semantics=("parallel",),
            vmem_limit_bytes=32 * 1024 * 1024,
        ),
        input_output_aliases={0: 0},
    )(x2d)

    out_flat = out2d.reshape(-1)
    if padded_len != n:
        out_flat = out_flat[:n]
    return out_flat.reshape(orig_shape)


if __name__ == "__main__":
    key = jax.random.PRNGKey(0)
    # NCHW input: batch=2, channels=4, spatial=16x16
    x = jax.random.normal(key, (2, 4, 16, 16), dtype=jnp.float32)

    # Reference computed first (kernel donates/aliases its input buffer).
    y_ref = jnp.maximum(x, 0.0)

    y = relu_pallas(x)
    jax.block_until_ready(y)

    assert y.shape == x.shape and y.dtype == x.dtype
    assert jnp.allclose(y, y_ref)

    print("KERNEL_OK")
</pallas_src>

<mosaic_0001>
module attributes {stable_mosaic.version = 11 : i64} {
  func.func @_relu_kernel(%arg0: i32, %arg1: memref<16x128xf32, #tpu.memory_space<vmem>>, %arg2: memref<16x128xf32, #tpu.memory_space<vmem>>) attributes {dimension_semantics = [#tpu.dimension_semantics<parallel>], iteration_bounds = array<i64: 1>, scalar_prefetch = 0 : i64, scratch_operands = 0 : i64, tpu.core_type = #tpu.core_type<tc>, window_params = [{transform_indices = @transform_0, window_bounds = array<i64: 16, 128>}, {transform_indices = @transform_1, window_bounds = array<i64: 16, 128>}]} {
    %c0 = arith.constant 0 : index
    %c0_0 = arith.constant 0 : index
    %0 = vector.load %arg1[%c0, %c0_0] : memref<16x128xf32, #tpu.memory_space<vmem>>, vector<16x128xf32>
    %cst = arith.constant 0.000000e+00 : f32
    %1 = vector.broadcast %cst : f32 to vector<16x128xf32>
    %2 = arith.maximumf %0, %1 : vector<16x128xf32>
    %c0_1 = arith.constant 0 : index
    %c0_2 = arith.constant 0 : index
    %3 = vector.load %arg2[%c0_1, %c0_2] : memref<16x128xf32, #tpu.memory_space<vmem>>, vector<16x128xf32>
    tpu.vector_store %arg2[%c0_1, %c0_2], %2 {strides = array<i32>} : memref<16x128xf32, #tpu.memory_space<vmem>>, vector<16x128xf32>,
    return
  }
  func.func @transform_0(%arg0: i32) -> (i32, i32) {
    %c0_i32 = arith.constant 0 : i32
    %c0_i32_0 = arith.constant 0 : i32
    return %arg0, %c0_i32 : i32, i32
  }
  func.func @transform_1(%arg0: i32) -> (i32, i32) {
    %c0_i32 = arith.constant 0 : i32
    %c0_i32_0 = arith.constant 0 : i32
    return %arg0, %c0_i32 : i32, i32
  }
}

</mosaic_0001>

<llo_original>
// kernel: tpu_custom_call.1
$region0: #{tpu_custom_call.1}
  #allocation0 [shape = 'u32[]', space=smem, size = 0x4, offset = 0x4, fixed_abs, tag = 'smem constant byte address 0x4 - core index']
  #allocation1 [shape = 'u32[72,128]{1,0:T(1,128)}', space=vmem, size = 0x9000, scoped, tag = 'internal scratch']
  %s0 = inlined_call_operand.hbm [shape: f32[16,128], index: 0, kind: input, shape index: {}, may-alias: {0,1}]
  %s1 = inlined_call_operand.hbm [shape: f32[16,128], index: 1, kind: output, shape index: {}, may-alias: {0,1}]
  %s2 = sld [smem:[#allocation0]]
  $region18: #{tpu_custom_call.1} parent=0
    _
  %s4 = ssub.s32 1, %s2
  %s5 = scalar_select 0, %s4, %s2
  $region1: #{tpu_custom_call.1} parent=0
    #allocation2 [shape = 'u8[8192]{0}', space=vmem, size = 0x2000, scoped, tag = 'input window, operand 0, single buffered']
    #allocation3 [shape = 's32[1]{0}', space=sflag, size = 0x4, scoped, tag = 'scoped memory for tpu_custom_call.1']
    #allocation4 [shape = 's32[1]{0}', space=sflag, size = 0x4, scoped, tag = 'scoped memory for tpu_custom_call.1']
    #allocation5 [shape = 'u8[8192]{0}', space=vmem, size = 0x2000, scoped, tag = 'output window, operand 0, single buffered']
    %6 = vsyncpa [#allocation3], 0
    %7 = vsyncpa [#allocation4], 0
    // Predicated region
    $region2: #{tpu_custom_call.1} parent=1 // pred_check
      _
    $region3: #{tpu_custom_call.1} parent=1 // pred_check_branch
      %9 = sbr.rel (0) target = $region5
    $region4: #{tpu_custom_call.1} parent=1 // pred_region
      %11 = vsyncadd [#allocation3], 0
      %s12 = sshll.u32 %s0, 4
      %s13 = int_to_ptr.hbm [resolvable:$true] %s12
      %s14 = sshll.u32 [#allocation2], 4
      %s15 = int_to_ptr.vmem [resolvable:$true] %s14
      %20 = dma.hbm_to_vmem [thread:$0]  %s13, 256, %s15, [#allocation3], 128, 128, 8
    $region5: #{tpu_custom_call.1} parent=1 // pred_fallthru
      _
    // Predicated region
    $region6: #{tpu_custom_call.1} parent=1 // pred_check
      _
    $region7: #{tpu_custom_call.1} parent=1 // pred_check_branch
      %22 = sbr.rel (0) target = $region9
    $region8: #{tpu_custom_call.1} parent=1 // pred_region
      %24 = dma.done [#allocation3], 256
    $region9: #{tpu_custom_call.1} parent=1 // pred_fallthru
      _
    %v25 = vld [vmem:[#allocation2] sm:$0xff]
    %v26 = vld [vmem:[#allocation2 + $0x8] sm:$0xff]
    %v27 = vmax.f32 %v25, 0.0
    %v28 = vmax.f32 %v26, 0.0
    %29 = vst [vmem:[#allocation5] sm:$0xff] %v27
    %30 = vst [vmem:[#allocation5 + $0x8] sm:$0xff] %v28
    // Predicated region
    $region10: #{tpu_custom_call.1} parent=1 // pred_check
      _
    $region11: #{tpu_custom_call.1} parent=1 // pred_check_branch
      %32 = sbr.rel (0) target = $region13
    $region12: #{tpu_custom_call.1} parent=1 // pred_region
      %34 = vsyncadd [#allocation4], 0
      %s35 = sshll.u32 [#allocation5], 4
      %s36 = int_to_ptr.vmem [resolvable:$true] %s35
      %s37 = sshll.u32 %s1, 4
      %s38 = int_to_ptr.hbm [resolvable:$true] %s37
      %43 = dma.vmem_to_hbm [thread:$0]  %s36, 256, %s38, [#allocation4], 128, 128, 8
    $region13: #{tpu_custom_call.1} parent=1 // pred_fallthru
      _
    // Predicated region
    $region14: #{tpu_custom_call.1} parent=1 // pred_check
      _
    $region15: #{tpu_custom_call.1} parent=1 // pred_check_branch
      %45 = sbr.rel (0) target = $region17
    $region16: #{tpu_custom_call.1} parent=1 // pred_region
      %47 = dma.done [#allocation4], 256
    $region17: #{tpu_custom_call.1} parent=1 // pred_fallthru
      _
    %48 = vsyncpa [#allocation3], 1
    %49 = vsyncpa [#allocation4], 1

</llo_original>
